<compile_context>
chip_gen: v7x
topology: tpu7x:2x2x1
jax: 0.10.0
libtpu: 0.0.40
codegen_flags: <defaults>
</compile_context>

<pallas_src>
import functools
import math

import jax
import jax.numpy as jnp
from jax.experimental import pallas as pl
from jax.experimental.pallas import tpu as pltpu

LN_EPS = 1e-5  # PyTorch nn.LayerNorm default


def _layer_norm(x, gamma, beta):
    # centered two-pass statistics (numerically safe post-residual)
    m = jnp.mean(x, axis=-1, keepdims=True)
    c = x - m
    var = jnp.mean(c * c, axis=-1, keepdims=True)
    return c * jax.lax.rsqrt(var + LN_EPS) * gamma + beta


# ---------------------------------------------------------------------------
# Pass 1: fused QKV projection kernel
# ---------------------------------------------------------------------------
def qkv_kernel(x_ref, wqkv_ref, bqkv_ref, q_ref, kv_ref, *, mm_dtype):
    D = x_ref.shape[-1]
    x = x_ref[...].astype(mm_dtype)
    # one (tile, D) @ (D, 3D) MXU pass; accumulate in f32, add f32 bias
    qkv = jnp.dot(x, wqkv_ref[...], preferred_element_type=jnp.float32)
    qkv = qkv + bqkv_ref[...]
    q_ref[...] = qkv[:, :D].astype(q_ref.dtype)        # Q already pre-scaled
    kv_ref[...] = qkv[:, D:].astype(kv_ref.dtype)       # [K | V]


# ---------------------------------------------------------------------------
# Pass 2: attention + output projection + FFN + LayerNorms
# ---------------------------------------------------------------------------
def attn_ffn_kernel(x_ref, q_ref, kv_ref, bias_ref, wo_ref, w1_ref, b1_ref,
                    w2_ref, vec_ref, o_ref, ctx_ref, *, heads, mm_dtype):
    TQ, D = x_ref.shape
    S = kv_ref.shape[0]
    dh = D // heads

    vec = vec_ref[...]                                   # (6, D) packed f32 vectors
    b_o, ln1_g, ln1_b, b_2, ln2_g, ln2_b = (vec[i:i + 1, :] for i in range(6))

    def mm(a, b):
        # astype is a no-op when operand is already mm_dtype (weights are)
        return jnp.dot(a.astype(mm_dtype), b.astype(mm_dtype),
                       preferred_element_type=jnp.float32)

    q_all = q_ref[...]                                   # (TQ, D)  mm_dtype, pre-scaled
    kv = kv_ref[...]                                     # (S, 2D)  mm_dtype
    k_all = kv[:, :D]
    v_all = kv[:, D:]
    # hoisted once (JAX does not CSE broadcast_in_dim inside the loop)
    bias_b = jnp.broadcast_to(bias_ref[...], (TQ, S))    # additive 0 / -1e9, f32

    # --- multi-head self-attention -----------------------------------------
    for h in range(heads):                               # static unroll over heads
        lo = h * dh
        # Q @ K^T without an explicit transpose: contract the last dims.
        s = jax.lax.dot_general(q_all[:, lo:lo + dh], k_all[:, lo:lo + dh],
                                dimension_numbers=(((1,), (1,)), ((), ())),
                                preferred_element_type=jnp.float32)
        s = s + bias_b
        s = s - jnp.max(s, axis=-1, keepdims=True)
        p = jnp.exp(s)
        a = p * pl.reciprocal(jnp.sum(p, axis=-1, keepdims=True), approx=True)
        # each head's context lands in its lane slice of the (TQ, D) buffer
        ctx_ref[:, lo:lo + dh] = mm(a, v_all[:, lo:lo + dh])

    # single full-depth (TQ, D) @ (D, D) output projection
    attn = mm(ctx_ref[...], wo_ref[...]) + b_o

    # residual + post-norm (norm_before=False); dropout = identity
    x1 = _layer_norm(x_ref[...] + attn, ln1_g, ln1_b)

    # --- feed forward (ReLU) -------------------------------------------------
    h1 = jnp.maximum(mm(x1, w1_ref[...]) + b1_ref[...], 0.0)
    x2 = _layer_norm(x1 + mm(h1, w2_ref[...]) + b_2, ln2_g, ln2_b)

    o_ref[...] = x2.astype(o_ref.dtype)


# ---------------------------------------------------------------------------
# Wrapper
# ---------------------------------------------------------------------------
def _vmem_budget(required_bytes):
    try:
        cap = int(pltpu.get_tpu_info().vmem_capacity_bytes)
    except Exception:
        cap = 128 << 20
    cap = max(16 << 20, cap - (12 << 20))        # leave compiler-scratch headroom
    return int(min(cap, max(16 << 20, required_bytes)))


def _const_spec(shape, weight_buffers):
    nd = len(shape)
    idx = lambda b, t, nd=nd: (0,) * nd          # constant -> stays VMEM resident
    if weight_buffers == 1:
        return pl.BlockSpec(shape, idx, pipeline_mode=pl.Buffered(1))
    return pl.BlockSpec(shape, idx)


def transformer_encoder_layer(x, mask, packed, heads, *, q_tile=None,
                              compute_dtype=None, weight_buffers=1):
    B, S, D = x.shape
    F = packed["w1"].shape[1]
    if compute_dtype is None:
        compute_dtype = packed["wqkv"].dtype     # weights ship in the matmul dtype
    if q_tile is None:
        q_tile = S if S <= 256 else 256          # (128 can be preferable on v5e)
    if q_tile != S:
        assert q_tile % 8 == 0 and S % q_tile == 0, (S, q_tile)
    num_q = S // q_tile

    # Additive attention bias (0 = attend, -1e9 = masked) built in plain JAX.
    if mask is None:
        attn_bias = jnp.zeros((B, 1, S), jnp.float32)
    else:
        attn_bias = jnp.where(mask == 0.0, jnp.float32(-1e9), jnp.float32(0.0))

    wb = packed["wo"].dtype.itemsize
    cb = jnp.dtype(compute_dtype).itemsize

    # ---------------- pass 1: QKV projection (K/V computed once per batch row)
    est_pre = ((D * 3 * D * wb + 3 * D * 4) * weight_buffers
               + 2 * (q_tile * D * 4 + q_tile * D * cb + q_tile * 2 * D * cb)
               + 4 * (2 * q_tile * 3 * D))
    q_proj, kv_proj = pl.pallas_call(
        functools.partial(qkv_kernel, mm_dtype=compute_dtype),
        grid=(B, num_q),
        in_specs=[
            pl.BlockSpec((None, q_tile, D), lambda b, t: (b, t, 0)),
            _const_spec((D, 3 * D), weight_buffers),
            _const_spec((1, 3 * D), weight_buffers),
        ],
        out_specs=[
            pl.BlockSpec((None, q_tile, D), lambda b, t: (b, t, 0)),
            pl.BlockSpec((None, q_tile, 2 * D), lambda b, t: (b, t, 0)),
        ],
        out_shape=(jax.ShapeDtypeStruct((B, S, D), compute_dtype),
                   jax.ShapeDtypeStruct((B, S, 2 * D), compute_dtype)),
        compiler_params=pltpu.CompilerParams(
            dimension_semantics=("parallel", "parallel"),
            vmem_limit_bytes=_vmem_budget(est_pre * 5 // 4)),
    )(x, packed["wqkv"], packed["bqkv"])

    # ---------------- pass 2: attention + W_o + FFN + LayerNorms -------------
    weights_b = ((D * D + D * F + F * D) * wb + (F + 6 * D) * 4) * weight_buffers
    act_b = 2 * (q_tile * D * 4          # x tile (double-buffered)
                 + q_tile * D * cb       # q tile
                 + S * 2 * D * cb        # [K|V] slab
                 + S * 4                 # mask bias
                 + q_tile * D * 4)       # output tile
    live_b = q_tile * D * 4 + 4 * (3 * q_tile * S + q_tile * F + 8 * q_tile * D)
    est_main = weights_b + act_b + live_b

    kern = functools.partial(attn_ffn_kernel, heads=heads, mm_dtype=compute_dtype)
    return pl.pallas_call(
        kern,
        grid=(B, num_q),
        in_specs=[
            pl.BlockSpec((None, q_tile, D), lambda b, qt: (b, qt, 0)),       # x (residual)
            pl.BlockSpec((None, q_tile, D), lambda b, qt: (b, qt, 0)),       # Q tile
            pl.BlockSpec((None, S, 2 * D), lambda b, qt: (b, 0, 0)),         # [K|V] full seq
            pl.BlockSpec((None, 1, S), lambda b, qt: (b, 0, 0)),             # additive mask bias
            _const_spec((D, D), weight_buffers),                             # W_o
            _const_spec((D, F), weight_buffers),                             # W_1
            _const_spec((1, F), weight_buffers),                             # b_1 (f32)
            _const_spec((F, D), weight_buffers),                             # W_2
            _const_spec((6, D), weight_buffers),                             # packed f32 vectors
        ],
        out_specs=pl.BlockSpec((None, q_tile, D), lambda b, qt: (b, qt, 0)),
        out_shape=jax.ShapeDtypeStruct((B, S, D), x.dtype),
        scratch_shapes=[pltpu.VMEM((q_tile, D), jnp.float32)],               # head-context buffer
        compiler_params=pltpu.CompilerParams(
            dimension_semantics=("parallel", "parallel"),
            vmem_limit_bytes=_vmem_budget(est_main * 5 // 4)),
    )(x, q_proj, kv_proj, attn_bias, packed["wo"], packed["w1"], packed["b1"],
      packed["w2"], packed["vec"])


# Falls back to default double-buffered weight BlockSpecs if this JAX build
# rejects single-buffered pipeline_mode=pl.Buffered(1).
_WEIGHT_BUFFERS = 1


def _run_layer(x, mask, packed, heads, **kw):
    global _WEIGHT_BUFFERS
    try:
        return jax.block_until_ready(
            transformer_encoder_layer(x, mask, packed, heads,
                                      weight_buffers=_WEIGHT_BUFFERS, **kw))
    except Exception:
        if _WEIGHT_BUFFERS == 1:
            _WEIGHT_BUFFERS = 2
            return jax.block_until_ready(
                transformer_encoder_layer(x, mask, packed, heads,
                                          weight_buffers=2, **kw))
        raise


# ---------------------------------------------------------------------------
# Parameters
# ---------------------------------------------------------------------------
def init_layer_params(key, D, F):
    ks = jax.random.split(key, 6)

    def dense(k, din, dout):
        return jax.random.normal(k, (din, dout), jnp.float32) * (1.0 / math.sqrt(din))

    return dict(
        wq=dense(ks[0], D, D), bq=jnp.zeros((1, D), jnp.float32),
        wk=dense(ks[1], D, D), bk=jnp.zeros((1, D), jnp.float32),
        wv=dense(ks[2], D, D), bv=jnp.zeros((1, D), jnp.float32),
        wo=dense(ks[3], D, D), bo=jnp.zeros((1, D), jnp.float32),
        ln1_g=jnp.ones((1, D), jnp.float32), ln1_b=jnp.zeros((1, D), jnp.float32),
        w1=dense(ks[4], D, F), b1=jnp.zeros((1, F), jnp.float32),
        w2=dense(ks[5], F, D), b2=jnp.zeros((1, D), jnp.float32),
        ln2_g=jnp.ones((1, D), jnp.float32), ln2_b=jnp.zeros((1, D), jnp.float32),
    )


def pack_layer_params(p, heads, param_dtype=jnp.bfloat16):
    """Host-side packing: fused QKV (with 1/sqrt(dh) folded into the Q columns),
    big matrices cast to param_dtype (bf16 for production), small vectors kept f32."""
    D = p["wq"].shape[0]
    scale = 1.0 / math.sqrt(D // heads)
    wqkv = jnp.concatenate([p["wq"] * scale, p["wk"], p["wv"]], axis=1)   # (D, 3D)
    bqkv = jnp.concatenate([p["bq"] * scale, p["bk"], p["bv"]], axis=1)   # (1, 3D) f32
    return dict(
        wqkv=wqkv.astype(param_dtype),
        bqkv=bqkv.astype(jnp.float32),
        wo=p["wo"].astype(param_dtype),
        w1=p["w1"].astype(param_dtype), b1=p["b1"].astype(jnp.float32),
        w2=p["w2"].astype(param_dtype),
        vec=jnp.concatenate([p["bo"], p["ln1_g"], p["ln1_b"],
                             p["b2"], p["ln2_g"], p["ln2_b"]],
                            axis=0).astype(jnp.float32),                  # (6, D)
    )


# ---------------------------------------------------------------------------
# Pure-JAX reference (mirrors the PyTorch forward semantics, unpacked params)
# ---------------------------------------------------------------------------
def reference_layer(x, mask, p, heads):
    B, S, D = x.shape
    dh = D // heads

    def proj(w, b):
        return (x @ w + b).reshape(B, S, heads, dh).transpose(0, 2, 1, 3)

    q, k, v = proj(p["wq"], p["bq"]), proj(p["wk"], p["bk"]), proj(p["wv"], p["bv"])
    s = jnp.einsum("bhqd,bhkd->bhqk", q, k) / math.sqrt(dh)
    s = jnp.where(mask[:, :, None, :] == 0.0, -1e9, s)
    a = jax.nn.softmax(s, axis=-1)
    ctx = jnp.einsum("bhqk,bhkd->bhqd", a, v).transpose(0, 2, 1, 3).reshape(B, S, D)
    x1 = _layer_norm(x + ctx @ p["wo"] + p["bo"], p["ln1_g"], p["ln1_b"])
    h = jax.nn.relu(x1 @ p["w1"] + p["b1"])
    return _layer_norm(x1 + h @ p["w2"] + p["b2"], p["ln2_g"], p["ln2_b"])


if __name__ == "__main__":
    MODEL_DIM, D_FF, HEADS = 32, 64, 4
    B, S = 2, 8

    key = jax.random.PRNGKey(0)
    kp1, kp2, kx, km = jax.random.split(key, 4)

    params1 = init_layer_params(kp1, MODEL_DIM, D_FF)
    params2 = init_layer_params(kp2, MODEL_DIM, D_FF)
    # f32 weights for strict parity checks
    packed1 = pack_layer_params(params1, HEADS, param_dtype=jnp.float32)
    packed2 = pack_layer_params(params2, HEADS, param_dtype=jnp.float32)

    x = jax.random.normal(kx, (B, S, MODEL_DIM), jnp.float32)
    mask = jnp.ones((B, 1, S), jnp.float32).at[1, 0, S - 1].set(0.0)  # mask one pad pos

    # Two stacked encoder layers (single query tile).
    y = _run_layer(x, mask, packed1, HEADS)
    y = _run_layer(y, mask, packed2, HEADS)

    ref = reference_layer(reference_layer(x, mask, params1, HEADS), mask, params2, HEADS)
    assert y.shape == (B, S, MODEL_DIM)
    err = float(jnp.max(jnp.abs(y - ref)))
    assert err < 2e-2, f"mismatch vs reference: {err}"

    # Multi-query-tile path (S split into 8-row query tiles, K/V from the pre-pass).
    S2 = 16
    kx2, _ = jax.random.split(km)
    x2 = jax.random.normal(kx2, (B, S2, MODEL_DIM), jnp.float32)
    mask2 = jnp.ones((B, 1, S2), jnp.float32).at[1, 0, S2 - 3:].set(0.0)

    y2 = _run_layer(x2, mask2, packed1, HEADS, q_tile=8)
    ref2 = reference_layer(x2, mask2, params1, HEADS)
    assert y2.shape == (B, S2, MODEL_DIM)
    err2 = float(jnp.max(jnp.abs(y2 - ref2)))
    assert err2 < 2e-2, f"multi-tile mismatch vs reference: {err2}"

    # bf16-weight production path (smoke test, loose tolerance).
    packed_bf16 = pack_layer_params(params1, HEADS, param_dtype=jnp.bfloat16)
    y3 = _run_layer(x2, mask2, packed_bf16, HEADS, q_tile=8)
    assert y3.shape == (B, S2, MODEL_DIM)
    err3 = float(jnp.max(jnp.abs(y3 - ref2)))
    assert bool(jnp.all(jnp.isfinite(y3))) and err3 < 0.15, f"bf16 path mismatch: {err3}"

    print("KERNEL_OK")
</pallas_src>

<mosaic_0001>
module attributes {stable_mosaic.version = 11 : i64} {
  func.func @qkv_kernel(%arg0: i32, %arg1: i32, %arg2: memref<1x8x32xf32, #tpu.memory_space<vmem>>, %arg3: memref<32x96xf32, #tpu.memory_space<vmem>>, %arg4: memref<1x96xf32, #tpu.memory_space<vmem>>, %arg5: memref<1x8x32xf32, #tpu.memory_space<vmem>>, %arg6: memref<1x8x64xf32, #tpu.memory_space<vmem>>) attributes {dimension_semantics = [#tpu.dimension_semantics<parallel>, #tpu.dimension_semantics<parallel>], iteration_bounds = array<i64: 2, 1>, scalar_prefetch = 0 : i64, scratch_operands = 0 : i64, tpu.core_type = #tpu.core_type<tc>, window_params = [{transform_indices = @transform_0, window_bounds = array<i64: 1, 8, 32>}, {pipeline_mode = #tpu.pipeline_mode<synchronous>, transform_indices = @transform_1, window_bounds = array<i64: 32, 96>}, {pipeline_mode = #tpu.pipeline_mode<synchronous>, transform_indices = @transform_2, window_bounds = array<i64: 1, 96>}, {transform_indices = @transform_3, window_bounds = array<i64: 1, 8, 32>}, {transform_indices = @transform_4, window_bounds = array<i64: 1, 8, 64>}]} {
    %c0 = arith.constant 0 : index
    %c0_0 = arith.constant 0 : index
    %c0_1 = arith.constant 0 : index
    %0 = vector.load %arg2[%c0, %c0_0, %c0_1] : memref<1x8x32xf32, #tpu.memory_space<vmem>>, vector<1x8x32xf32>
    %1 = vector.shape_cast %0 : vector<1x8x32xf32> to vector<8x32xf32>
    %c0_2 = arith.constant 0 : index
    %c0_3 = arith.constant 0 : index
    %2 = vector.load %arg3[%c0_2, %c0_3] : memref<32x96xf32, #tpu.memory_space<vmem>>, vector<32x96xf32>
    %cst = arith.constant dense<0.000000e+00> : vector<8x96xf32>
    %3 = tpu.matmul %1, %2, %cst {dimension_numbers = #tpu.dot_dimension_numbers<[1], [0], [0], [1], [0, 0, 1, 1], [], []>} : vector<8x32xf32>, vector<32x96xf32>, vector<8x96xf32> -> vector<8x96xf32>
    %c0_4 = arith.constant 0 : index
    %c0_5 = arith.constant 0 : index
    %4 = vector.load %arg4[%c0_4, %c0_5] : memref<1x96xf32, #tpu.memory_space<vmem>>, vector<1x96xf32>
    %5 = vector.broadcast %4 : vector<1x96xf32> to vector<8x96xf32>
    %6 = arith.addf %3, %5 : vector<8x96xf32>
    %7 = vector.extract_strided_slice %6 {offsets = [0, 0], sizes = [8, 32], strides = [1, 1]} : vector<8x96xf32> to vector<8x32xf32>
    %c0_6 = arith.constant 0 : index
    %c0_7 = arith.constant 0 : index
    %c0_8 = arith.constant 0 : index
    %8 = vector.load %arg5[%c0_6, %c0_7, %c0_8] : memref<1x8x32xf32, #tpu.memory_space<vmem>>, vector<1x8x32xf32>
    %9 = vector.shape_cast %8 : vector<1x8x32xf32> to vector<8x32xf32>
    %10 = vector.shape_cast %7 : vector<8x32xf32> to vector<1x8x32xf32>
    tpu.vector_store %arg5[%c0_6, %c0_7, %c0_8], %10 {strides = array<i32>} : memref<1x8x32xf32, #tpu.memory_space<vmem>>, vector<1x8x32xf32>,
    %11 = vector.extract_strided_slice %6 {offsets = [0, 32], sizes = [8, 64], strides = [1, 1]} : vector<8x96xf32> to vector<8x64xf32>
    %c0_9 = arith.constant 0 : index
    %c0_10 = arith.constant 0 : index
    %c0_11 = arith.constant 0 : index
    %12 = vector.load %arg6[%c0_9, %c0_10, %c0_11] : memref<1x8x64xf32, #tpu.memory_space<vmem>>, vector<1x8x64xf32>
    %13 = vector.shape_cast %12 : vector<1x8x64xf32> to vector<8x64xf32>
    %14 = vector.shape_cast %11 : vector<8x64xf32> to vector<1x8x64xf32>
    tpu.vector_store %arg6[%c0_9, %c0_10, %c0_11], %14 {strides = array<i32>} : memref<1x8x64xf32, #tpu.memory_space<vmem>>, vector<1x8x64xf32>,
    return
  }
  func.func @transform_0(%arg0: i32, %arg1: i32) -> (i32, i32, i32) {
    %c0_i32 = arith.constant 0 : i32
    %c0_i32_0 = arith.constant 0 : i32
    return %arg0, %arg1, %c0_i32 : i32, i32, i32
  }
  func.func @transform_1(%arg0: i32, %arg1: i32) -> (i32, i32) {
    %c0_i32 = arith.constant 0 : i32
    %c0_i32_0 = arith.constant 0 : i32
    %c0_i32_1 = arith.constant 0 : i32
    return %c0_i32, %c0_i32_0 : i32, i32
  }
  func.func @transform_2(%arg0: i32, %arg1: i32) -> (i32, i32) {
    %c0_i32 = arith.constant 0 : i32
    %c0_i32_0 = arith.constant 0 : i32
    %c0_i32_1 = arith.constant 0 : i32
    return %c0_i32, %c0_i32_0 : i32, i32
  }
  func.func @transform_3(%arg0: i32, %arg1: i32) -> (i32, i32, i32) {
    %c0_i32 = arith.constant 0 : i32
    %c0_i32_0 = arith.constant 0 : i32
    return %arg0, %arg1, %c0_i32 : i32, i32, i32
  }
  func.func @transform_4(%arg0: i32, %arg1: i32) -> (i32, i32, i32) {
    %c0_i32 = arith.constant 0 : i32
    %c0_i32_0 = arith.constant 0 : i32
    return %arg0, %arg1, %c0_i32 : i32, i32, i32
  }
}

module attributes {stable_mosaic.version = 11 : i64} {
  func.func @qkv_kernel(%arg0: i32, %arg1: i32, %arg2: memref<1x8x32xf32, #tpu.memory_space<vmem>>, %arg3: memref<32x96xf32, #tpu.memory_space<vmem>>, %arg4: memref<1x96xf32, #tpu.memory_space<vmem>>, %arg5: memref<1x8x32xf32, #tpu.memory_space<vmem>>, %arg6: memref<1x8x64xf32, #tpu.memory_space<vmem>>) attributes {dimension_semantics = [#tpu.dimension_semantics<parallel>, #tpu.dimension_semantics<parallel>], iteration_bounds = array<i64: 2, 1>, scalar_prefetch = 0 : i64, scratch_operands = 0 : i64, tpu.core_type = #tpu.core_type<tc>, window_params = [{transform_indices = @transform_0, window_bounds = array<i64: 1, 8, 32>}, {pipeline_mode = #tpu.pipeline_mode<synchronous>, transform_indices = @transform_1, window_bounds = array<i64: 32, 96>}, {pipeline_mode = #tpu.pipeline_mode<synchronous>, transform_indices = @transform_2, window_bounds = array<i64: 1, 96>}, {transform_indices = @transform_3, window_bounds = array<i64: 1, 8, 32>}, {transform_indices = @transform_4, window_bounds = array<i64: 1, 8, 64>}]} {
    %c0 = arith.constant 0 : index
    %c0_0 = arith.constant 0 : index
    %c0_1 = arith.constant 0 : index
    %0 = vector.load %arg2[%c0, %c0_0, %c0_1] : memref<1x8x32xf32, #tpu.memory_space<vmem>>, vector<1x8x32xf32>
    %1 = vector.shape_cast %0 : vector<1x8x32xf32> to vector<8x32xf32>
    %c0_2 = arith.constant 0 : index
    %c0_3 = arith.constant 0 : index
    %2 = vector.load %arg3[%c0_2, %c0_3] : memref<32x96xf32, #tpu.memory_space<vmem>>, vector<32x96xf32>
    %cst = arith.constant dense<0.000000e+00> : vector<8x96xf32>
    %3 = tpu.matmul %1, %2, %cst {dimension_numbers = #tpu.dot_dimension_numbers<[1], [0], [0], [1], [0, 0, 1, 1], [], []>} : vector<8x32xf32>, vector<32x96xf32>, vector<8x96xf32> -> vector<8x96xf32>
    %c0_4 = arith.constant 0 : index
    %c0_5 = arith.constant 0 : index
    %4 = vector.load %arg4[%c0_4, %c0_5] : memref<1x96xf32, #tpu.memory_space<vmem>>, vector<1x96xf32>
    %5 = vector.broadcast %4 : vector<1x96xf32> to vector<8x96xf32>
    %6 = arith.addf %3, %5 : vector<8x96xf32>
    %7 = vector.extract_strided_slice %6 {offsets = [0, 0], sizes = [8, 32], strides = [1, 1]} : vector<8x96xf32> to vector<8x32xf32>
    %c0_6 = arith.constant 0 : index
    %c0_7 = arith.constant 0 : index
    %c0_8 = arith.constant 0 : index
    %8 = vector.load %arg5[%c0_6, %c0_7, %c0_8] : memref<1x8x32xf32, #tpu.memory_space<vmem>>, vector<1x8x32xf32>
    %9 = vector.shape_cast %8 : vector<1x8x32xf32> to vector<8x32xf32>
    %10 = vector.shape_cast %7 : vector<8x32xf32> to vector<1x8x32xf32>
    tpu.vector_store %arg5[%c0_6, %c0_7, %c0_8], %10 {strides = array<i32>} : memref<1x8x32xf32, #tpu.memory_space<vmem>>, vector<1x8x32xf32>,
    %11 = vector.extract_strided_slice %6 {offsets = [0, 32], sizes = [8, 64], strides = [1, 1]} : vector<8x96xf32> to vector<8x64xf32>
    %c0_9 = arith.constant 0 : index
    %c0_10 = arith.constant 0 : index
    %c0_11 = arith.constant 0 : index
    %12 = vector.load %arg6[%c0_9, %c0_10, %c0_11] : memref<1x8x64xf32, #tpu.memory_space<vmem>>, vector<1x8x64xf32>
    %13 = vector.shape_cast %12 : vector<1x8x64xf32> to vector<8x64xf32>
    %14 = vector.shape_cast %11 : vector<8x64xf32> to vector<1x8x64xf32>
    tpu.vector_store %arg6[%c0_9, %c0_10, %c0_11], %14 {strides = array<i32>} : memref<1x8x64xf32, #tpu.memory_space<vmem>>, vector<1x8x64xf32>,
    return
  }
  func.func @transform_0(%arg0: i32, %arg1: i32) -> (i32, i32, i32) {
    %c0_i32 = arith.constant 0 : i32
    %c0_i32_0 = arith.constant 0 : i32
    return %arg0, %arg1, %c0_i32 : i32, i32, i32
  }
  func.func @transform_1(%arg0: i32, %arg1: i32) -> (i32, i32) {
    %c0_i32 = arith.constant 0 : i32
    %c0_i32_0 = arith.constant 0 : i32
    %c0_i32_1 = arith.constant 0 : i32
    return %c0_i32, %c0_i32_0 : i32, i32
  }
  func.func @transform_2(%arg0: i32, %arg1: i32) -> (i32, i32) {
    %c0_i32 = arith.constant 0 : i32
    %c0_i32_0 = arith.constant 0 : i32
    %c0_i32_1 = arith.constant 0 : i32
    return %c0_i32, %c0_i32_0 : i32, i32
  }
  func.func @transform_3(%arg0: i32, %arg1: i32) -> (i32, i32, i32) {
    %c0_i32 = arith.constant 0 : i32
    %c0_i32_0 = arith.constant 0 : i32
    return %arg0, %arg1, %c0_i32 : i32, i32, i32
  }
  func.func @transform_4(%arg0: i32, %arg1: i32) -> (i32, i32, i32) {
    %c0_i32 = arith.constant 0 : i32
    %c0_i32_0 = arith.constant 0 : i32
    return %arg0, %arg1, %c0_i32 : i32, i32, i32
  }
}

</mosaic_0001>

<llo_original>
// kernel: tpu_custom_call.1
$region0: #{tpu_custom_call.1}
  #allocation0 [shape = 'u32[]', space=smem, size = 0x4, offset = 0x4, fixed_abs, tag = 'smem constant byte address 0x4 - core index']
  #allocation1 [shape = 'u32[144,128]{1,0:T(1,128)}', space=vmem, size = 0x12000, scoped, tag = 'internal scratch']
  %s0 = inlined_call_operand.hbm [shape: f32[2,8,32], index: 0, kind: input, shape index: {}]
  %s1 = inlined_call_operand.hbm [shape: f32[32,96], index: 1, kind: input, shape index: {}]
  %s2 = inlined_call_operand.vmem [shape: f32[1,96], index: 2, kind: input, shape index: {}]
  %s3 = inlined_call_operand.hbm [shape: f32[2,8,32], index: 3, kind: output, shape index: {0}]
  %s4 = inlined_call_operand.hbm [shape: f32[2,8,64], index: 4, kind: output, shape index: {1}]
  %5 = xla_tuple %s3, %s4
  %s6 = sld [smem:[#allocation0]]
  $region61: #{tpu_custom_call.1} parent=0
    _
  %s8 = ssub.s32 1, %s6
  %s9 = scalar_select 0, %s8, %s6
  $region1: #{tpu_custom_call.1} parent=0
    #allocation2 [shape = 'u8[8192]{0}', space=vmem, size = 0x2000, scoped, tag = 'input window, operand 0']
    #allocation3 [shape = 's32[2]{0}', space=sflag, size = 0x8, scoped, tag = 'scoped memory for tpu_custom_call.1']
    #allocation4 [shape = 's32[2]{0}', space=sflag, size = 0x8, scoped, tag = 'scoped memory for tpu_custom_call.1']
    #allocation5 [shape = 'u8[16384]{0}', space=vmem, size = 0x4000, scoped, tag = 'input window, operand 1, single buffered']
    #allocation6 [shape = 's32[1]{0}', space=sflag, size = 0x4, scoped, tag = 'scoped memory for tpu_custom_call.1']
    #allocation7 [shape = 'u8[8192]{0}', space=vmem, size = 0x2000, scoped, tag = 'output window, operand 0']
    #allocation8 [shape = 'u8[8192]{0}', space=vmem, size = 0x2000, scoped, tag = 'output window, operand 1']
    #allocation9 [shape = 's32[2]{0}', space=sflag, size = 0x8, scoped, tag = 'scoped memory for tpu_custom_call.1']
    %10 = vsyncpa [#allocation3], 0
    %s11 = scalar_lea.sflag [#allocation3], 1
    %12 = vsyncpa %s11, 0
    %13 = vsyncpa [#allocation6], 0
    %14 = vsyncpa [#allocation4], 0
    %s15 = scalar_lea.sflag [#allocation4], 1
    %16 = vsyncpa %s15, 0
    %17 = vsyncpa [#allocation9], 0
    %s18 = scalar_lea.sflag [#allocation9], 1
    %19 = vsyncpa %s18, 0
    loop: start=0, step=1, limit=4
    $region2: #{tpu_custom_call.1} parent=1 // loop_pre_header
      _
    $region3: #{tpu_custom_call.1} parent=1 // loop_header
      %s21 = sphi 0, %s25
      %p22 = scmp.ge.s32.totalorder %s21, 4
      %s28 = sphi 0, %s40
      %s29 = sphi 0, %s36
      %s30 = sphi 0, %s28
      %s31 = sphi 0, %s29
      %s32 = sphi 0, %s30
      %s33 = sphi 0, %s31
      %s45 = sphi 0, %s47
      %s48 = sphi 0, %s45
      %s49 = sphi 0, %s48
      %s65 = sphi 0, %s49
      %s69 = sphi 0, %s69
      %s71 = sphi 0, %s69
      %s72 = sphi 0, %s71
      %s86 = sphi 0, %s72
      %s90 = sphi 0, %s90
      %s92 = sphi 0, %s90
      %s93 = sphi 0, %s92
      %s107 = sphi 0, %s93
      %s115 = sphi 0, %s117
      %s118 = sphi 0, %s115
      %s119 = sphi 0, %s118
      %s135 = sphi 0, %s119
      %s143 = sphi 0, %s145
      %s146 = sphi 0, %s143
      %s147 = sphi 0, %s146
      %s163 = sphi 0, %s147
    $region4: #{tpu_custom_call.1} parent=1 // loop_header_branch
      %24 = sbr.rel (%p22) target = $region8
    $region5: #{tpu_custom_call.1} parent=1 // loop_body
      %s26 = ssub.s32 %s21, 1
      %s27 = ssub.s32 %s21, 2
      %s34 = sadd.s32 1, %s29
      %p35 = scmp.ge.s32.totalorder %s34, 1
      %s36 = scalar_select %p35, 0, %s34
      %s37 = sadd.s32 1, %s28
      %s38 = scalar_select %p35, %s37, %s28
      %p39 = scmp.ge.s32.totalorder %s38, 2
      %s40 = scalar_select %p39, 0, %s38
      %s41 = ssub.s32 %s28, %s40
      %s42 = ssub.s32 %s29, %s36
      %s43 = sor.u32 %s41, %s42
      %p44 = scmp.eq.s32.totalorder %s43, 0
      %s46 = sadd.s32 %s45, 1
      %s47 = scalar_select %p44, %s45, %s46
      %p50 = pneg %p44
      %p51 = scmp.eq.s32.totalorder %s21, 1
      %p52 = por %p50, %p51
      %p53 = scmp.ne.s32.totalorder %s45, %s48
      %p54 = scmp.eq.s32.totalorder %s21, 0
      %p55 = por %p53, %p54
      %p56 = scmp.ne.s32.totalorder %s45, %s48
      %p57 = scmp.eq.s32.totalorder %s26, 1
      %p58 = por %p56, %p57
      %p59 = scmp.ne.s32.totalorder %s48, %s49
      %p60 = scmp.eq.s32.totalorder %s26, 0
      %p61 = por %p59, %p60
      %p62 = scmp.ne.s32.totalorder %s48, %s49
      %p63 = scmp.eq.s32.totalorder %s27, 1
      %p64 = por %p62, %p63
      %p66 = scmp.ne.s32.totalorder %s49, %s65
      %p67 = scmp.eq.s32.totalorder %s27, 0
      %p68 = por %p66, %p67
      %s70 = sadd.s32 %s69, 1
      %p73 = scmp.eq.s32.totalorder %s21, 1
      %p74 = scmp.ne.s32.totalorder %s69, %s71
      %p75 = scmp.eq.s32.totalorder %s21, 0
      %p76 = por %p74, %p75
      %p77 = scmp.ne.s32.totalorder %s69, %s71
      %p78 = scmp.eq.s32.totalorder %s26, 1
      %p79 = por %p77, %p78
      %p80 = scmp.ne.s32.totalorder %s71, %s72
      %p81 = scmp.eq.s32.totalorder %s26, 0
      %p82 = por %p80, %p81
      %p83 = scmp.ne.s32.totalorder %s71, %s72
      %p84 = scmp.eq.s32.totalorder %s27, 1
      %p85 = por %p83, %p84
      %p87 = scmp.ne.s32.totalorder %s72, %s86
      %p88 = scmp.eq.s32.totalorder %s27, 0
      %p89 = por %p87, %p88
      %s91 = sadd.s32 %s90, 1
      %p94 = scmp.eq.s32.totalorder %s21, 1
      %p95 = scmp.ne.s32.totalorder %s90, %s92
      %p96 = scmp.eq.s32.totalorder %s21, 0
      %p97 = por %p95, %p96
      %p98 = scmp.ne.s32.totalorder %s90, %s92
      %p99 = scmp.eq.s32.totalorder %s26, 1
      %p100 = por %p98, %p99
      %p101 = scmp.ne.s32.totalorder %s92, %s93
      %p102 = scmp.eq.s32.totalorder %s26, 0
      %p103 = por %p101, %p102
      %p104 = scmp.ne.s32.totalorder %s92, %s93
      %p105 = scmp.eq.s32.totalorder %s27, 1
      %p106 = por %p104, %p105
      %p108 = scmp.ne.s32.totalorder %s93, %s107
      %p109 = scmp.eq.s32.totalorder %s27, 0
      %p110 = por %p108, %p109
      %s111 = ssub.s32 %s28, %s40
      %s112 = ssub.s32 %s29, %s36
      %s113 = sor.u32 %s111, %s112
      %p114 = scmp.eq.s32.totalorder %s113, 0
      %s116 = sadd.s32 %s115, 1
      %s117 = scalar_select %p114, %s115, %s116
      %p120 = pneg %p114
      %p121 = scmp.eq.s32.totalorder %s21, 1
      %p122 = por %p120, %p121
      %p123 = scmp.ne.s32.totalorder %s115, %s118
      %p124 = scmp.eq.s32.totalorder %s21, 0
      %p125 = por %p123, %p124
      %p126 = scmp.ne.s32.totalorder %s115, %s118
      %p127 = scmp.eq.s32.totalorder %s26, 1
      %p128 = por %p126, %p127
      %p129 = scmp.ne.s32.totalorder %s118, %s119
      %p130 = scmp.eq.s32.totalorder %s26, 0
      %p131 = por %p129, %p130
      %p132 = scmp.ne.s32.totalorder %s118, %s119
      %p133 = scmp.eq.s32.totalorder %s27, 1
      %p134 = por %p132, %p133
      %p136 = scmp.ne.s32.totalorder %s119, %s135
      %p137 = scmp.eq.s32.totalorder %s27, 0
      %p138 = por %p136, %p137
      %s139 = ssub.s32 %s28, %s40
      %s140 = ssub.s32 %s29, %s36
      %s141 = sor.u32 %s139, %s140
      %p142 = scmp.eq.s32.totalorder %s141, 0
      %s144 = sadd.s32 %s143, 1
      %s145 = scalar_select %p142, %s143, %s144
      %p148 = pneg %p142
      %p149 = scmp.eq.s32.totalorder %s21, 1
      %p150 = por %p148, %p149
      %p151 = scmp.ne.s32.totalorder %s143, %s146
      %p152 = scmp.eq.s32.totalorder %s21, 0
      %p153 = por %p151, %p152
      %p154 = scmp.ne.s32.totalorder %s143, %s146
      %p155 = scmp.eq.s32.totalorder %s26, 1
      %p156 = por %p154, %p155
      %p157 = scmp.ne.s32.totalorder %s146, %s147
      %p158 = scmp.eq.s32.totalorder %s26, 0
      %p159 = por %p157, %p158
      %p160 = scmp.ne.s32.totalorder %s146, %s147
      %p161 = scmp.eq.s32.totalorder %s27, 1
      %p162 = por %p160, %p161
      %p164 = scmp.ne.s32.totalorder %s147, %s163
      %p165 = scmp.eq.s32.totalorder %s27, 0
      %p166 = por %p164, %p165
      %p167 = scmp.le.s32.totalorder 1, %s21
      %p168 = scmp.lt.s32.totalorder %s21, 3
      %p169 = pnand %p167, %p168
      %p170 = pneg %p169
      // Predicated region
      $region9: #{tpu_custom_call.1} parent=5 // pred_check
        _
      $region10: #{tpu_custom_call.1} parent=5 // pred_check_branch
        %172 = sbr.rel (%p169) target = $region12
      $region11: #{tpu_custom_call.1} parent=5 // pred_region
        %s173 = ssub.s32 %s21, 1
        // Predicated region
        $region13: #{tpu_custom_call.1} parent=11 // pred_check
          %p174 = pneg %p82
        $region14: #{tpu_custom_call.1} parent=11 // pred_check_branch
          %176 = sbr.rel (%p174) target = $region16
        $region15: #{tpu_custom_call.1} parent=11 // pred_region
          %s178 = ssub.s32 512, 512
          %179 = vsyncadd [#allocation6], %s178
          %s180 = sshll.u32 [#allocation5], 4
          %s181 = int_to_ptr.vmem [resolvable:$true] %s180
          %186 = dma.hbm_to_vmem [thread:$0]  %s1, 512, %s181, [#allocation6], 128, 128, 8
        $region16: #{tpu_custom_call.1} parent=11 // pred_fallthru
          _
        // Predicated region
        $region17: #{tpu_custom_call.1} parent=11 // pred_check
          %p187 = pneg %p103
        $region18: #{tpu_custom_call.1} parent=11 // pred_check_branch
          %189 = sbr.rel (%p187) target = $region20
        $region19: #{tpu_custom_call.1} parent=11 // pred_region
          _
        $region20: #{tpu_custom_call.1} parent=11 // pred_fallthru
          _
      $region12: #{tpu_custom_call.1} parent=5 // pred_fallthru
        _
      %p190 = scmp.lt.s32.totalorder %s21, 2
      // Predicated region
      $region21: #{tpu_custom_call.1} parent=5 // pred_check
        %p191 = pneg %p190
      $region22: #{tpu_custom_call.1} parent=5 // pred_check_branch
        %193 = sbr.rel (%p191) target = $region24
      $region23: #{tpu_custom_call.1} parent=5 // pred_region
        // Predicated region
        $region25: #{tpu_custom_call.1} parent=23 // pred_check
          %p194 = pneg %p55
        $region26: #{tpu_custom_call.1} parent=23 // pred_check_branch
          %196 = sbr.rel (%p194) target = $region28
        $region27: #{tpu_custom_call.1} parent=23 // pred_region
          %s197 = sand.u32 %s45, 1
          %s198 = scalar_lea.sflag [#allocation3], %s197
          %s199 = sand.u32 %s45, 1
          %s200 = smul.addr %s199, 8
          %s201 = scalar_lea.vmem [#allocation2], %s200
          %s203 = ssub.s32 128, 128
          %204 = vsyncadd %s198, %s203
          %s205 = sadd.s32 %s29, %s28
          %s206 = smul.addr %s205, 128
          %s207 = scalar_lea.hbm %s0, %s206
          %s209 = sshll.u32 %s201, 4
          %s210 = int_to_ptr.vmem [resolvable:$true] %s209
          %212 = dma.hbm_to_vmem [thread:$0]  %s207, 128, %s210, %s198
        $region28: #{tpu_custom_call.1} parent=23 // pred_fallthru
          _
      $region24: #{tpu_custom_call.1} parent=5 // pred_fallthru
        _
      %p213 = scmp.le.s32.totalorder 1, %s21
      %p214 = scmp.lt.s32.totalorder %s21, 3
      %p215 = pnand %p213, %p214
      %p216 = pneg %p215
      // Predicated region
      $region29: #{tpu_custom_call.1} parent=5 // pred_check
        _
      $region30: #{tpu_custom_call.1} parent=5 // pred_check_branch
        %218 = sbr.rel (%p215) target = $region32
      $region31: #{tpu_custom_call.1} parent=5 // pred_region
        %s219 = ssub.s32 %s21, 1
        %s220 = sand.u32 %s48, 1
        %s221 = scalar_lea.sflag [#allocation3], %s220
        %s222 = sand.u32 %s48, 1
        %s223 = smul.addr %s222, 8
        %s224 = scalar_lea.vmem [#allocation2], %s223
        // Predicated region
        $region33: #{tpu_custom_call.1} parent=31 // pred_check
          %p225 = pneg %p61
        $region34: #{tpu_custom_call.1} parent=31 // pred_check_branch
          %227 = sbr.rel (%p225) target = $region36
        $region35: #{tpu_custom_call.1} parent=31 // pred_region
          %228 = dma.done %s221, 128
        $region36: #{tpu_custom_call.1} parent=31 // pred_fallthru
          _
        // Predicated region
        $region37: #{tpu_custom_call.1} parent=31 // pred_check
          %p229 = pneg %p82
        $region38: #{tpu_custom_call.1} parent=31 // pred_check_branch
          %231 = sbr.rel (%p229) target = $region40
        $region39: #{tpu_custom_call.1} parent=31 // pred_region
          %232 = dma.done [#allocation6], 512
        $region40: #{tpu_custom_call.1} parent=31 // pred_fallthru
          _
        %s233 = sand.u32 %s48, 1
        %s234 = scalar_lea.sflag [#allocation3], %s233
        %s235 = sand.u32 %s48, 1
        %s236 = smul.addr %s235, 8
        %s237 = scalar_lea.vmem [#allocation2], %s236
        %p238 = pneg %p61
        %p239 = pneg %p58
        %p240 = pneg %p82
        %p241 = pneg %p79
        %p242 = pneg %p103
        %p243 = pneg %p100
        %p244 = pneg %p131
        %p245 = pneg %p128
        %s246 = sand.u32 %s118, 1
        %s247 = scalar_lea.sflag [#allocation4], %s246
        %s248 = sand.u32 %s118, 1
        %s249 = smul.addr %s248, 8
        %s250 = scalar_lea.vmem [#allocation7], %s249
        %p251 = pneg %p159
        %p252 = pneg %p156
        %s253 = sand.u32 %s146, 1
        %s254 = scalar_lea.sflag [#allocation9], %s253
        %s255 = sand.u32 %s146, 1
        %s256 = smul.addr %s255, 8
        %s257 = scalar_lea.vmem [#allocation8], %s256
        %v258 = vld [vmem:[%s224] sm:$0xff]
        %v259 = vld [vmem:[#allocation5] sm:$0xff]
        %v260 = vld [vmem:[#allocation5 + $0x8] sm:$0xff]
        %v261 = vld [vmem:[#allocation5 + $0x10] sm:$0xff]
        %v262 = vld [vmem:[#allocation5 + $0x18] sm:$0xff]
        %v263 = vld [vmem:[%s2] sm:$0x1]
        %v265 = vlaneseq
        %v266 = vshrl.u32 %v265, 7
        %v267 = vsub.s32 0, %v266
        %v268 = vrot.slane %v263, %v267
        %vm270 = vcmask 261120
        %v272 = vsel %vm270, %v258, 0
        %274 = vmatprep.subr.mxu0 0.0
        %275 = vmatpush1.msra.mxu0 %v259
        %276 = vmatprep.subr.mxu0 0.0
        %277 = vmatpush1.msra.mxu0 %v260
        %278 = vmatprep.subr.mxu0 0.0
        %279 = vmatpush1.msra.mxu0 %v261
        %280 = vmatprep.subr.mxu0 0.0
        %281 = vmatpush1.msra.mxu0 %v262
        %282 = vmatprep.subr.mxu0 0.0
        %283 = vmatpush1.msra.mxu0 0.0
        %284 = vmatprep.subr.mxu0 0.0
        %285 = vmatpush1.msra.mxu0 0.0
        %286 = vmatprep.subr.mxu0 0.0
        %287 = vmatpush1.msra.mxu0 0.0
        %288 = vmatprep.subr.mxu0 0.0
        %289 = vmatpush1.msra.mxu0 0.0
        %290 = vmatprep.subr.mxu0 0.0
        %291 = vmatpush1.msra.mxu0 0.0
        %292 = vmatprep.subr.mxu0 0.0
        %293 = vmatpush1.msra.mxu0 0.0
        %294 = vmatprep.subr.mxu0 0.0
        %295 = vmatpush1.msra.mxu0 0.0
        %296 = vmatprep.subr.mxu0 0.0
        %297 = vmatpush1.msra.mxu0 0.0
        %298 = vmatprep.subr.mxu0 0.0
        %299 = vmatpush1.msra.mxu0 0.0
        %300 = vmatprep.subr.mxu0 0.0
        %301 = vmatpush1.msra.mxu0 0.0
        %302 = vmatprep.subr.mxu0 0.0
        %303 = vmatpush1.msra.mxu0 0.0
        %304 = vmatprep.subr.mxu0 0.0
        %305 = vmatpush1.msra.mxu0 0.0
        %306 = vmatprep.subr.mxu0 0.0
        %307 = vmatpush1.msra.mxu0 0.0
        %308 = vmatprep.subr.mxu0 0.0
        %309 = vmatpush1.msra.mxu0 0.0
        %310 = vmatprep.subr.mxu0 0.0
        %311 = vmatpush1.msra.mxu0 0.0
        %312 = vmatprep.subr.mxu0 0.0
        %313 = vmatpush1.msra.mxu0 0.0
        %314 = vmatprep.subr.mxu0 0.0
        %315 = vmatpush1.msra.mxu0 0.0
        %316 = vmatprep.subr.mxu0 0.0
        %317 = vmatpush1.msra.mxu0 0.0
        %318 = vmatprep.subr.mxu0 0.0
        %319 = vmatpush1.msra.mxu0 0.0
        %320 = vmatprep.subr.mxu0 0.0
        %321 = vmatpush1.msra.mxu0 0.0
        %322 = vmatprep.subr.mxu0 0.0
        %323 = vmatpush1.msra.mxu0 0.0
        %324 = vmatprep.subr.mxu0 0.0
        %325 = vmatpush1.msra.mxu0 0.0
        %326 = vmatprep.subr.mxu0 0.0
        %327 = vmatpush1.msra.mxu0 0.0
        %328 = vmatprep.subr.mxu0 0.0
        %329 = vmatpush1.msra.mxu0 0.0
        %330 = vmatprep.subr.mxu0 0.0
        %331 = vmatpush1.msra.mxu0 0.0
        %332 = vmatprep.subr.mxu0 0.0
        %333 = vmatpush1.msra.mxu0 0.0
        %334 = vmatprep.subr.mxu0 0.0
        %335 = vmatpush1.msra.mxu0 0.0
        %336 = vmatprep.subr.mxu0 0.0
        %337 = vmatpush1.msra.mxu0 0.0
        %338 = vmatprep.mubr.f32.mxu0 0.0
        %339 = vmatmul.mubr.f32.gmra.mrb[0].mxu0 %v272
        %v340 = vpop.f32.mrb[0].mxu0
        %v341 = vadd.f32 %v268, %v340
        %v342 = vpop.f32.mrb[0].mxu0
        %343 = vdwg.mxu0
        %344 = vst.msk [vmem:[%s250] sm:$0xff] %vm270, %v341
        %346 = vrot.lane.b32.xlu0 %v341, 96
        %v347 = vpop.permute.xlu0 %346
        %vm349 = vcmask 523264
        %350 = vst.msk [vmem:[%s257] sm:$0xff] %vm349, %v347
        %s351 = sand.u32 %s118, 1
        %s352 = scalar_lea.sflag [#allocation4], %s351
        %s353 = sand.u32 %s118, 1
        %s354 = smul.addr %s353, 8
        %s355 = scalar_lea.vmem [#allocation7], %s354
        %s356 = sand.u32 %s146, 1
        %s357 = scalar_lea.sflag [#allocation9], %s356
        %s358 = sand.u32 %s146, 1
        %s359 = smul.addr %s358, 8
        %s360 = scalar_lea.vmem [#allocation8], %s359
        // Predicated region
        $region41: #{tpu_custom_call.1} parent=31 // pred_check
          %p361 = pneg %p128
        $region42: #{tpu_custom_call.1} parent=31 // pred_check_branch
          %363 = sbr.rel (%p361) target = $region44
        $region43: #{tpu_custom_call.1} parent=31 // pred_region
          %s365 = ssub.s32 128, 128
          %366 = vsyncadd %s352, %s365
          %s367 = sadd.s32 %s31, %s30
          %s368 = smul.addr %s367, 128
          %s369 = scalar_lea.hbm %s3, %s368
          %s371 = sshll.u32 %s355, 4
          %s372 = int_to_ptr.vmem [resolvable:$true] %s371
          %374 = dma.vmem_to_hbm [thread:$0]  %s372, 128, %s369, %s352
        $region44: #{tpu_custom_call.1} parent=31 // pred_fallthru
          _
        // Predicated region
        $region45: #{tpu_custom_call.1} parent=31 // pred_check
          %p375 = pneg %p156
        $region46: #{tpu_custom_call.1} parent=31 // pred_check_branch
          %377 = sbr.rel (%p375) target = $region48
        $region47: #{tpu_custom_call.1} parent=31 // pred_region
          %s379 = ssub.s32 128, 128
          %380 = vsyncadd %s357, %s379
          %s381 = sadd.s32 %s31, %s30
          %s382 = smul.addr %s381, 128
          %s383 = scalar_lea.hbm %s4, %s382
          %s385 = sshll.u32 %s360, 4
          %s386 = int_to_ptr.vmem [resolvable:$true] %s385
          %388 = dma.vmem_to_hbm [thread:$0]  %s386, 128, %s383, %s357
        $region48: #{tpu_custom_call.1} parent=31 // pred_fallthru
          _
      $region32: #{tpu_custom_call.1} parent=5 // pred_fallthru
        _
      %p389 = scmp.le.s32.totalorder 2, %s21
      // Predicated region
      $region49: #{tpu_custom_call.1} parent=5 // pred_check
        %p390 = pneg %p389
      $region50: #{tpu_custom_call.1} parent=5 // pred_check_branch
        %392 = sbr.rel (%p390) target = $region52
      $region51: #{tpu_custom_call.1} parent=5 // pred_region
        %s393 = ssub.s32 %s21, 2
        // Predicated region
        $region53: #{tpu_custom_call.1} parent=51 // pred_check
          %p394 = pneg %p134
        $region54: #{tpu_custom_call.1} parent=51 // pred_check_branch
          %396 = sbr.rel (%p394) target = $region56
        $region55: #{tpu_custom_call.1} parent=51 // pred_region
          %s397 = sand.u32 %s119, 1
          %s398 = scalar_lea.sflag [#allocation4], %s397
          %s399 = sand.u32 %s119, 1
          %s400 = smul.addr %s399, 8
          %s401 = scalar_lea.vmem [#allocation7], %s400
          %402 = dma.done %s398, 128
        $region56: #{tpu_custom_call.1} parent=51 // pred_fallthru
          _
        // Predicated region
        $region57: #{tpu_custom_call.1} parent=51 // pred_check
          %p403 = pneg %p162
        $region58: #{tpu_custom_call.1} parent=51 // pred_check_branch
          %405 = sbr.rel (%p403) target = $region60
        $region59: #{tpu_custom_call.1} parent=51 // pred_region
          %s406 = sand.u32 %s147, 1
          %s407 = scalar_lea.sflag [#allocation9], %s406
          %s408 = sand.u32 %s147, 1
          %s409 = smul.addr %s408, 8
          %s410 = scalar_lea.vmem [#allocation8], %s409
          %411 = dma.done %s407, 128
        $region60: #{tpu_custom_call.1} parent=51 // pred_fallthru
          _
      $region52: #{tpu_custom_call.1} parent=5 // pred_fallthru
        _
    $region6: #{tpu_custom_call.1} parent=1 // loop_footer
      %s25 = sadd.s32 1, %s21
    $region7: #{tpu_custom_call.1} parent=1 // loop_footer_branch
      %20 = sbr.rel target = $region3
    $region8: #{tpu_custom_call.1} parent=1 // loop_exit
      _
    %412 = vsyncpa [#allocation3], 1
    %s413 = scalar_lea.sflag [#allocation3], 1
    %414 = vsyncpa %s413, 1
    %415 = vsyncpa [#allocation6], 1
    %416 = vsyncpa [#allocation4], 1
    %s417 = scalar_lea.sflag [#allocation4], 1
    %418 = vsyncpa %s417, 1
    %419 = vsyncpa [#allocation9], 1
    %s420 = scalar_lea.sflag [#allocation9], 1
    %421 = vsyncpa %s420, 1

// kernel: tpu_custom_call.1
$region0: #{tpu_custom_call.1}
  #allocation0 [shape = 'u32[]', space=smem, size = 0x4, offset = 0x4, fixed_abs, tag = 'smem constant byte address 0x4 - core index']
  #allocation1 [shape = 'u32[144,128]{1,0:T(1,128)}', space=vmem, size = 0x12000, scoped, tag = 'internal scratch']
  %s0 = inlined_call_operand.hbm [shape: f32[2,8,32], index: 0, kind: input, shape index: {}]
  %s1 = inlined_call_operand.hbm [shape: f32[32,96], index: 1, kind: input, shape index: {}]
  %s2 = inlined_call_operand.vmem [shape: f32[1,96], index: 2, kind: input, shape index: {}]
  %s3 = inlined_call_operand.hbm [shape: f32[2,8,32], index: 3, kind: output, shape index: {0}]
  %s4 = inlined_call_operand.hbm [shape: f32[2,8,64], index: 4, kind: output, shape index: {1}]
  %5 = xla_tuple %s3, %s4
  %s6 = sld [smem:[#allocation0]]
  $region61: #{tpu_custom_call.1} parent=0
    _
  %s8 = ssub.s32 1, %s6
  %s9 = scalar_select 0, %s8, %s6
  $region1: #{tpu_custom_call.1} parent=0
    #allocation2 [shape = 'u8[8192]{0}', space=vmem, size = 0x2000, scoped, tag = 'input window, operand 0']
    #allocation3 [shape = 's32[2]{0}', space=sflag, size = 0x8, scoped, tag = 'scoped memory for tpu_custom_call.1']
    #allocation4 [shape = 's32[2]{0}', space=sflag, size = 0x8, scoped, tag = 'scoped memory for tpu_custom_call.1']
    #allocation5 [shape = 'u8[16384]{0}', space=vmem, size = 0x4000, scoped, tag = 'input window, operand 1, single buffered']
    #allocation6 [shape = 's32[1]{0}', space=sflag, size = 0x4, scoped, tag = 'scoped memory for tpu_custom_call.1']
    #allocation7 [shape = 'u8[8192]{0}', space=vmem, size = 0x2000, scoped, tag = 'output window, operand 0']
    #allocation8 [shape = 'u8[8192]{0}', space=vmem, size = 0x2000, scoped, tag = 'output window, operand 1']
    #allocation9 [shape = 's32[2]{0}', space=sflag, size = 0x8, scoped, tag = 'scoped memory for tpu_custom_call.1']
    %10 = vsyncpa [#allocation3], 0
    %s11 = scalar_lea.sflag [#allocation3], 1
    %12 = vsyncpa %s11, 0
    %13 = vsyncpa [#allocation6], 0
    %14 = vsyncpa [#allocation4], 0
    %s15 = scalar_lea.sflag [#allocation4], 1
    %16 = vsyncpa %s15, 0
    %17 = vsyncpa [#allocation9], 0
    %s18 = scalar_lea.sflag [#allocation9], 1
    %19 = vsyncpa %s18, 0
    loop: start=0, step=1, limit=4
    $region2: #{tpu_custom_call.1} parent=1 // loop_pre_header
      _
    $region3: #{tpu_custom_call.1} parent=1 // loop_header
      %s21 = sphi 0, %s25
      %p22 = scmp.ge.s32.totalorder %s21, 4
      %s28 = sphi 0, %s40
      %s29 = sphi 0, %s36
      %s30 = sphi 0, %s28
      %s31 = sphi 0, %s29
      %s32 = sphi 0, %s30
      %s33 = sphi 0, %s31
      %s45 = sphi 0, %s47
      %s48 = sphi 0, %s45
      %s49 = sphi 0, %s48
      %s65 = sphi 0, %s49
      %s69 = sphi 0, %s69
      %s71 = sphi 0, %s69
      %s72 = sphi 0, %s71
      %s86 = sphi 0, %s72
      %s90 = sphi 0, %s90
      %s92 = sphi 0, %s90
      %s93 = sphi 0, %s92
      %s107 = sphi 0, %s93
      %s115 = sphi 0, %s117
      %s118 = sphi 0, %s115
      %s119 = sphi 0, %s118
      %s135 = sphi 0, %s119
      %s143 = sphi 0, %s145
      %s146 = sphi 0, %s143
      %s147 = sphi 0, %s146
      %s163 = sphi 0, %s147
    $region4: #{tpu_custom_call.1} parent=1 // loop_header_branch
      %24 = sbr.rel (%p22) target = $region8
    $region5: #{tpu_custom_call.1} parent=1 // loop_body
      %s26 = ssub.s32 %s21, 1
      %s27 = ssub.s32 %s21, 2
      %s34 = sadd.s32 1, %s29
      %p35 = scmp.ge.s32.totalorder %s34, 1
      %s36 = scalar_select %p35, 0, %s34
      %s37 = sadd.s32 1, %s28
      %s38 = scalar_select %p35, %s37, %s28
      %p39 = scmp.ge.s32.totalorder %s38, 2
      %s40 = scalar_select %p39, 0, %s38
      %s41 = ssub.s32 %s28, %s40
      %s42 = ssub.s32 %s29, %s36
      %s43 = sor.u32 %s41, %s42
      %p44 = scmp.eq.s32.totalorder %s43, 0
      %s46 = sadd.s32 %s45, 1
      %s47 = scalar_select %p44, %s45, %s46
      %p50 = pneg %p44
      %p51 = scmp.eq.s32.totalorder %s21, 1
      %p52 = por %p50, %p51
      %p53 = scmp.ne.s32.totalorder %s45, %s48
      %p54 = scmp.eq.s32.totalorder %s21, 0
      %p55 = por %p53, %p54
      %p56 = scmp.ne.s32.totalorder %s45, %s48
      %p57 = scmp.eq.s32.totalorder %s26, 1
      %p58 = por %p56, %p57
      %p59 = scmp.ne.s32.totalorder %s48, %s49
      %p60 = scmp.eq.s32.totalorder %s26, 0
      %p61 = por %p59, %p60
      %p62 = scmp.ne.s32.totalorder %s48, %s49
      %p63 = scmp.eq.s32.totalorder %s27, 1
      %p64 = por %p62, %p63
      %p66 = scmp.ne.s32.totalorder %s49, %s65
      %p67 = scmp.eq.s32.totalorder %s27, 0
      %p68 = por %p66, %p67
      %s70 = sadd.s32 %s69, 1
      %p73 = scmp.eq.s32.totalorder %s21, 1
      %p74 = scmp.ne.s32.totalorder %s69, %s71
      %p75 = scmp.eq.s32.totalorder %s21, 0
      %p76 = por %p74, %p75
      %p77 = scmp.ne.s32.totalorder %s69, %s71
      %p78 = scmp.eq.s32.totalorder %s26, 1
      %p79 = por %p77, %p78
      %p80 = scmp.ne.s32.totalorder %s71, %s72
      %p81 = scmp.eq.s32.totalorder %s26, 0
      %p82 = por %p80, %p81
      %p83 = scmp.ne.s32.totalorder %s71, %s72
      %p84 = scmp.eq.s32.totalorder %s27, 1
      %p85 = por %p83, %p84
      %p87 = scmp.ne.s32.totalorder %s72, %s86
      %p88 = scmp.eq.s32.totalorder %s27, 0
      %p89 = por %p87, %p88
      %s91 = sadd.s32 %s90, 1
      %p94 = scmp.eq.s32.totalorder %s21, 1
      %p95 = scmp.ne.s32.totalorder %s90, %s92
      %p96 = scmp.eq.s32.totalorder %s21, 0
      %p97 = por %p95, %p96
      %p98 = scmp.ne.s32.totalorder %s90, %s92
      %p99 = scmp.eq.s32.totalorder %s26, 1
      %p100 = por %p98, %p99
      %p101 = scmp.ne.s32.totalorder %s92, %s93
      %p102 = scmp.eq.s32.totalorder %s26, 0
      %p103 = por %p101, %p102
      %p104 = scmp.ne.s32.totalorder %s92, %s93
      %p105 = scmp.eq.s32.totalorder %s27, 1
      %p106 = por %p104, %p105
      %p108 = scmp.ne.s32.totalorder %s93, %s107
      %p109 = scmp.eq.s32.totalorder %s27, 0
      %p110 = por %p108, %p109
      %s111 = ssub.s32 %s28, %s40
      %s112 = ssub.s32 %s29, %s36
      %s113 = sor.u32 %s111, %s112
      %p114 = scmp.eq.s32.totalorder %s113, 0
      %s116 = sadd.s32 %s115, 1
      %s117 = scalar_select %p114, %s115, %s116
      %p120 = pneg %p114
      %p121 = scmp.eq.s32.totalorder %s21, 1
      %p122 = por %p120, %p121
      %p123 = scmp.ne.s32.totalorder %s115, %s118
      %p124 = scmp.eq.s32.totalorder %s21, 0
      %p125 = por %p123, %p124
      %p126 = scmp.ne.s32.totalorder %s115, %s118
      %p127 = scmp.eq.s32.totalorder %s26, 1
      %p128 = por %p126, %p127
      %p129 = scmp.ne.s32.totalorder %s118, %s119
      %p130 = scmp.eq.s32.totalorder %s26, 0
      %p131 = por %p129, %p130
      %p132 = scmp.ne.s32.totalorder %s118, %s119
      %p133 = scmp.eq.s32.totalorder %s27, 1
      %p134 = por %p132, %p133
      %p136 = scmp.ne.s32.totalorder %s119, %s135
      %p137 = scmp.eq.s32.totalorder %s27, 0
      %p138 = por %p136, %p137
      %s139 = ssub.s32 %s28, %s40
      %s140 = ssub.s32 %s29, %s36
      %s141 = sor.u32 %s139, %s140
      %p142 = scmp.eq.s32.totalorder %s141, 0
      %s144 = sadd.s32 %s143, 1
      %s145 = scalar_select %p142, %s143, %s144
      %p148 = pneg %p142
      %p149 = scmp.eq.s32.totalorder %s21, 1
      %p150 = por %p148, %p149
      %p151 = scmp.ne.s32.totalorder %s143, %s146
      %p152 = scmp.eq.s32.totalorder %s21, 0
      %p153 = por %p151, %p152
      %p154 = scmp.ne.s32.totalorder %s143, %s146
      %p155 = scmp.eq.s32.totalorder %s26, 1
      %p156 = por %p154, %p155
      %p157 = scmp.ne.s32.totalorder %s146, %s147
      %p158 = scmp.eq.s32.totalorder %s26, 0
      %p159 = por %p157, %p158
      %p160 = scmp.ne.s32.totalorder %s146, %s147
      %p161 = scmp.eq.s32.totalorder %s27, 1
      %p162 = por %p160, %p161
      %p164 = scmp.ne.s32.totalorder %s147, %s163
      %p165 = scmp.eq.s32.totalorder %s27, 0
      %p166 = por %p164, %p165
      %p167 = scmp.le.s32.totalorder 1, %s21
      %p168 = scmp.lt.s32.totalorder %s21, 3
      %p169 = pnand %p167, %p168
      %p170 = pneg %p169
      // Predicated region
      $region9: #{tpu_custom_call.1} parent=5 // pred_check
        _
      $region10: #{tpu_custom_call.1} parent=5 // pred_check_branch
        %172 = sbr.rel (%p169) target = $region12
      $region11: #{tpu_custom_call.1} parent=5 // pred_region
        %s173 = ssub.s32 %s21, 1
        // Predicated region
        $region13: #{tpu_custom_call.1} parent=11 // pred_check
          %p174 = pneg %p82
        $region14: #{tpu_custom_call.1} parent=11 // pred_check_branch
          %176 = sbr.rel (%p174) target = $region16
        $region15: #{tpu_custom_call.1} parent=11 // pred_region
          %s178 = ssub.s32 512, 512
          %179 = vsyncadd [#allocation6], %s178
          %s180 = sshll.u32 [#allocation5], 4
          %s181 = int_to_ptr.vmem [resolvable:$true] %s180
          %186 = dma.hbm_to_vmem [thread:$0]  %s1, 512, %s181, [#allocation6], 128, 128, 8
        $region16: #{tpu_custom_call.1} parent=11 // pred_fallthru
          _
        // Predicated region
        $region17: #{tpu_custom_call.1} parent=11 // pred_check
          %p187 = pneg %p103
        $region18: #{tpu_custom_call.1} parent=11 // pred_check_branch
          %189 = sbr.rel (%p187) target = $region20
        $region19: #{tpu_custom_call.1} parent=11 // pred_region
          _
        $region20: #{tpu_custom_call.1} parent=11 // pred_fallthru
          _
      $region12: #{tpu_custom_call.1} parent=5 // pred_fallthru
        _
      %p190 = scmp.lt.s32.totalorder %s21, 2
      // Predicated region
      $region21: #{tpu_custom_call.1} parent=5 // pred_check
        %p191 = pneg %p190
      $region22: #{tpu_custom_call.1} parent=5 // pred_check_branch
        %193 = sbr.rel (%p191) target = $region24
      $region23: #{tpu_custom_call.1} parent=5 // pred_region
        // Predicated region
        $region25: #{tpu_custom_call.1} parent=23 // pred_check
          %p194 = pneg %p55
        $region26: #{tpu_custom_call.1} parent=23 // pred_check_branch
          %196 = sbr.rel (%p194) target = $region28
        $region27: #{tpu_custom_call.1} parent=23 // pred_region
          %s197 = sand.u32 %s45, 1
          %s198 = scalar_lea.sflag [#allocation3], %s197
          %s199 = sand.u32 %s45, 1
          %s200 = smul.addr %s199, 8
          %s201 = scalar_lea.vmem [#allocation2], %s200
          %s203 = ssub.s32 128, 128
          %204 = vsyncadd %s198, %s203
          %s205 = sadd.s32 %s29, %s28
          %s206 = smul.addr %s205, 128
          %s207 = scalar_lea.hbm %s0, %s206
          %s209 = sshll.u32 %s201, 4
          %s210 = int_to_ptr.vmem [resolvable:$true] %s209
          %212 = dma.hbm_to_vmem [thread:$0]  %s207, 128, %s210, %s198
        $region28: #{tpu_custom_call.1} parent=23 // pred_fallthru
          _
      $region24: #{tpu_custom_call.1} parent=5 // pred_fallthru
        _
      %p213 = scmp.le.s32.totalorder 1, %s21
      %p214 = scmp.lt.s32.totalorder %s21, 3
      %p215 = pnand %p213, %p214
      %p216 = pneg %p215
      // Predicated region
      $region29: #{tpu_custom_call.1} parent=5 // pred_check
        _
      $region30: #{tpu_custom_call.1} parent=5 // pred_check_branch
        %218 = sbr.rel (%p215) target = $region32
      $region31: #{tpu_custom_call.1} parent=5 // pred_region
        %s219 = ssub.s32 %s21, 1
        %s220 = sand.u32 %s48, 1
        %s221 = scalar_lea.sflag [#allocation3], %s220
        %s222 = sand.u32 %s48, 1
        %s223 = smul.addr %s222, 8
        %s224 = scalar_lea.vmem [#allocation2], %s223
        // Predicated region
        $region33: #{tpu_custom_call.1} parent=31 // pred_check
          %p225 = pneg %p61
        $region34: #{tpu_custom_call.1} parent=31 // pred_check_branch
          %227 = sbr.rel (%p225) target = $region36
        $region35: #{tpu_custom_call.1} parent=31 // pred_region
          %228 = dma.done %s221, 128
        $region36: #{tpu_custom_call.1} parent=31 // pred_fallthru
          _
        // Predicated region
        $region37: #{tpu_custom_call.1} parent=31 // pred_check
          %p229 = pneg %p82
        $region38: #{tpu_custom_call.1} parent=31 // pred_check_branch
          %231 = sbr.rel (%p229) target = $region40
        $region39: #{tpu_custom_call.1} parent=31 // pred_region
          %232 = dma.done [#allocation6], 512
        $region40: #{tpu_custom_call.1} parent=31 // pred_fallthru
          _
        %s233 = sand.u32 %s48, 1
        %s234 = scalar_lea.sflag [#allocation3], %s233
        %s235 = sand.u32 %s48, 1
        %s236 = smul.addr %s235, 8
        %s237 = scalar_lea.vmem [#allocation2], %s236
        %p238 = pneg %p61
        %p239 = pneg %p58
        %p240 = pneg %p82
        %p241 = pneg %p79
        %p242 = pneg %p103
        %p243 = pneg %p100
        %p244 = pneg %p131
        %p245 = pneg %p128
        %s246 = sand.u32 %s118, 1
        %s247 = scalar_lea.sflag [#allocation4], %s246
        %s248 = sand.u32 %s118, 1
        %s249 = smul.addr %s248, 8
        %s250 = scalar_lea.vmem [#allocation7], %s249
        %p251 = pneg %p159
        %p252 = pneg %p156
        %s253 = sand.u32 %s146, 1
        %s254 = scalar_lea.sflag [#allocation9], %s253
        %s255 = sand.u32 %s146, 1
        %s256 = smul.addr %s255, 8
        %s257 = scalar_lea.vmem [#allocation8], %s256
        %v258 = vld [vmem:[%s224] sm:$0xff]
        %v259 = vld [vmem:[#allocation5] sm:$0xff]
        %v260 = vld [vmem:[#allocation5 + $0x8] sm:$0xff]
        %v261 = vld [vmem:[#allocation5 + $0x10] sm:$0xff]
        %v262 = vld [vmem:[#allocation5 + $0x18] sm:$0xff]
        %v263 = vld [vmem:[%s2] sm:$0x1]
        %v265 = vlaneseq
        %v266 = vshrl.u32 %v265, 7
        %v267 = vsub.s32 0, %v266
        %v268 = vrot.slane %v263, %v267
        %vm270 = vcmask 261120
        %v272 = vsel %vm270, %v258, 0
        %274 = vmatprep.subr.mxu0 0.0
        %275 = vmatpush1.msra.mxu0 %v259
        %276 = vmatprep.subr.mxu0 0.0
        %277 = vmatpush1.msra.mxu0 %v260
        %278 = vmatprep.subr.mxu0 0.0
        %279 = vmatpush1.msra.mxu0 %v261
        %280 = vmatprep.subr.mxu0 0.0
        %281 = vmatpush1.msra.mxu0 %v262
        %282 = vmatprep.subr.mxu0 0.0
        %283 = vmatpush1.msra.mxu0 0.0
        %284 = vmatprep.subr.mxu0 0.0
        %285 = vmatpush1.msra.mxu0 0.0
        %286 = vmatprep.subr.mxu0 0.0
        %287 = vmatpush1.msra.mxu0 0.0
        %288 = vmatprep.subr.mxu0 0.0
        %289 = vmatpush1.msra.mxu0 0.0
        %290 = vmatprep.subr.mxu0 0.0
        %291 = vmatpush1.msra.mxu0 0.0
        %292 = vmatprep.subr.mxu0 0.0
        %293 = vmatpush1.msra.mxu0 0.0
        %294 = vmatprep.subr.mxu0 0.0
        %295 = vmatpush1.msra.mxu0 0.0
        %296 = vmatprep.subr.mxu0 0.0
        %297 = vmatpush1.msra.mxu0 0.0
        %298 = vmatprep.subr.mxu0 0.0
        %299 = vmatpush1.msra.mxu0 0.0
        %300 = vmatprep.subr.mxu0 0.0
        %301 = vmatpush1.msra.mxu0 0.0
        %302 = vmatprep.subr.mxu0 0.0
        %303 = vmatpush1.msra.mxu0 0.0
        %304 = vmatprep.subr.mxu0 0.0
        %305 = vmatpush1.msra.mxu0 0.0
        %306 = vmatprep.subr.mxu0 0.0
        %307 = vmatpush1.msra.mxu0 0.0
        %308 = vmatprep.subr.mxu0 0.0
        %309 = vmatpush1.msra.mxu0 0.0
        %310 = vmatprep.subr.mxu0 0.0
        %311 = vmatpush1.msra.mxu0 0.0
        %312 = vmatprep.subr.mxu0 0.0
        %313 = vmatpush1.msra.mxu0 0.0
        %314 = vmatprep.subr.mxu0 0.0
        %315 = vmatpush1.msra.mxu0 0.0
        %316 = vmatprep.subr.mxu0 0.0
        %317 = vmatpush1.msra.mxu0 0.0
        %318 = vmatprep.subr.mxu0 0.0
        %319 = vmatpush1.msra.mxu0 0.0
        %320 = vmatprep.subr.mxu0 0.0
        %321 = vmatpush1.msra.mxu0 0.0
        %322 = vmatprep.subr.mxu0 0.0
        %323 = vmatpush1.msra.mxu0 0.0
        %324 = vmatprep.subr.mxu0 0.0
        %325 = vmatpush1.msra.mxu0 0.0
        %326 = vmatprep.subr.mxu0 0.0
        %327 = vmatpush1.msra.mxu0 0.0
        %328 = vmatprep.subr.mxu0 0.0
        %329 = vmatpush1.msra.mxu0 0.0
        %330 = vmatprep.subr.mxu0 0.0
        %331 = vmatpush1.msra.mxu0 0.0
        %332 = vmatprep.subr.mxu0 0.0
        %333 = vmatpush1.msra.mxu0 0.0
        %334 = vmatprep.subr.mxu0 0.0
        %335 = vmatpush1.msra.mxu0 0.0
        %336 = vmatprep.subr.mxu0 0.0
        %337 = vmatpush1.msra.mxu0 0.0
        %338 = vmatprep.mubr.f32.mxu0 0.0
        %339 = vmatmul.mubr.f32.gmra.mrb[0].mxu0 %v272
        %v340 = vpop.f32.mrb[0].mxu0
        %v341 = vadd.f32 %v268, %v340
        %v342 = vpop.f32.mrb[0].mxu0
        %343 = vdwg.mxu0
        %344 = vst.msk [vmem:[%s250] sm:$0xff] %vm270, %v341
        %346 = vrot.lane.b32.xlu0 %v341, 96
        %v347 = vpop.permute.xlu0 %346
        %vm349 = vcmask 523264
        %350 = vst.msk [vmem:[%s257] sm:$0xff] %vm349, %v347
        %s351 = sand.u32 %s118, 1
        %s352 = scalar_lea.sflag [#allocation4], %s351
        %s353 = sand.u32 %s118, 1
        %s354 = smul.addr %s353, 8
        %s355 = scalar_lea.vmem [#allocation7], %s354
        %s356 = sand.u32 %s146, 1
        %s357 = scalar_lea.sflag [#allocation9], %s356
        %s358 = sand.u32 %s146, 1
        %s359 = smul.addr %s358, 8
        %s360 = scalar_lea.vmem [#allocation8], %s359
        // Predicated region
        $region41: #{tpu_custom_call.1} parent=31 // pred_check
          %p361 = pneg %p128
        $region42: #{tpu_custom_call.1} parent=31 // pred_check_branch
          %363 = sbr.rel (%p361) target = $region44
        $region43: #{tpu_custom_call.1} parent=31 // pred_region
          %s365 = ssub.s32 128, 128
          %366 = vsyncadd %s352, %s365
          %s367 = sadd.s32 %s31, %s30
          %s368 = smul.addr %s367, 128
          %s369 = scalar_lea.hbm %s3, %s368
          %s371 = sshll.u32 %s355, 4
          %s372 = int_to_ptr.vmem [resolvable:$true] %s371
          %374 = dma.vmem_to_hbm [thread:$0]  %s372, 128, %s369, %s352
        $region44: #{tpu_custom_call.1} parent=31 // pred_fallthru
          _
        // Predicated region
        $region45: #{tpu_custom_call.1} parent=31 // pred_check
          %p375 = pneg %p156
        $region46: #{tpu_custom_call.1} parent=31 // pred_check_branch
          %377 = sbr.rel (%p375) target = $region48
        $region47: #{tpu_custom_call.1} parent=31 // pred_region
          %s379 = ssub.s32 128, 128
          %380 = vsyncadd %s357, %s379
          %s381 = sadd.s32 %s31, %s30
          %s382 = smul.addr %s381, 128
          %s383 = scalar_lea.hbm %s4, %s382
          %s385 = sshll.u32 %s360, 4
          %s386 = int_to_ptr.vmem [resolvable:$true] %s385
          %388 = dma.vmem_to_hbm [thread:$0]  %s386, 128, %s383, %s357
        $region48: #{tpu_custom_call.1} parent=31 // pred_fallthru
          _
      $region32: #{tpu_custom_call.1} parent=5 // pred_fallthru
        _
      %p389 = scmp.le.s32.totalorder 2, %s21
      // Predicated region
      $region49: #{tpu_custom_call.1} parent=5 // pred_check
        %p390 = pneg %p389
      $region50: #{tpu_custom_call.1} parent=5 // pred_check_branch
        %392 = sbr.rel (%p390) target = $region52
      $region51: #{tpu_custom_call.1} parent=5 // pred_region
        %s393 = ssub.s32 %s21, 2
        // Predicated region
        $region53: #{tpu_custom_call.1} parent=51 // pred_check
          %p394 = pneg %p134
        $region54: #{tpu_custom_call.1} parent=51 // pred_check_branch
          %396 = sbr.rel (%p394) target = $region56
        $region55: #{tpu_custom_call.1} parent=51 // pred_region
          %s397 = sand.u32 %s119, 1
          %s398 = scalar_lea.sflag [#allocation4], %s397
          %s399 = sand.u32 %s119, 1
          %s400 = smul.addr %s399, 8
          %s401 = scalar_lea.vmem [#allocation7], %s400
          %402 = dma.done %s398, 128
        $region56: #{tpu_custom_call.1} parent=51 // pred_fallthru
          _
        // Predicated region
        $region57: #{tpu_custom_call.1} parent=51 // pred_check
          %p403 = pneg %p162
        $region58: #{tpu_custom_call.1} parent=51 // pred_check_branch
          %405 = sbr.rel (%p403) target = $region60
        $region59: #{tpu_custom_call.1} parent=51 // pred_region
          %s406 = sand.u32 %s147, 1
          %s407 = scalar_lea.sflag [#allocation9], %s406
          %s408 = sand.u32 %s147, 1
          %s409 = smul.addr %s408, 8
          %s410 = scalar_lea.vmem [#allocation8], %s409
          %411 = dma.done %s407, 128
        $region60: #{tpu_custom_call.1} parent=51 // pred_fallthru
          _
      $region52: #{tpu_custom_call.1} parent=5 // pred_fallthru
        _
    $region6: #{tpu_custom_call.1} parent=1 // loop_footer
      %s25 = sadd.s32 1, %s21
    $region7: #{tpu_custom_call.1} parent=1 // loop_footer_branch
      %20 = sbr.rel target = $region3
    $region8: #{tpu_custom_call.1} parent=1 // loop_exit
      _
    %412 = vsyncpa [#allocation3], 1
    %s413 = scalar_lea.sflag [#allocation3], 1
    %414 = vsyncpa %s413, 1
    %415 = vsyncpa [#allocation6], 1
    %416 = vsyncpa [#allocation4], 1
    %s417 = scalar_lea.sflag [#allocation4], 1
    %418 = vsyncpa %s417, 1
    %419 = vsyncpa [#allocation9], 1
    %s420 = scalar_lea.sflag [#allocation9], 1
    %421 = vsyncpa %s420, 1

</llo_original>
